<compile_context>
chip_gen: v7x
topology: tpu7x:2x2x1
jax: 0.10.0
libtpu: 0.0.40
codegen_flags: <defaults>
</compile_context>

<pallas_src>
import jax
import jax.numpy as jnp
import numpy as np
from jax import lax
from jax.experimental import pallas as pl
from jax.experimental.pallas import tpu as pltpu

# -------------------- model dims (small, synthetic) --------------------
B = 2        # batch
S = 8        # sequence length
H = 32       # token-embedding hidden size
D = 32       # sentence-embedding size
C = 2        # number of classes (siamese head output)
VOCAB = 64
C_PAD = 128  # lane-dense logits width; real logits are the first C columns


# -------------------- Pallas kernel --------------------
def _encode(ids, mask_f32, emb_table, proj_w, proj_b):
    """One-hot gather + masked mean pool + linear projection + tanh (in VMEM).

    ids       : (B, S)  int32
    mask_f32  : (B, S)  f32
    emb_table : (VOCAB, H) f32
    proj_w    : (H, D) f32
    proj_b    : (1, D) f32
    returns   : (B, D) f32 sentence embedding
    """
    vocab_iota = lax.broadcasted_iota(jnp.int32, (B, S, VOCAB), 2)
    onehot = (ids[:, :, None] == vocab_iota).astype(jnp.float32)        # (B,S,V)
    counts = jnp.sum(onehot * mask_f32[:, :, None], axis=1)             # (B,V)
    denom = jnp.maximum(jnp.sum(mask_f32, axis=1, keepdims=True), 1.0)  # (B,1)
    pooled = jnp.dot(counts, emb_table,
                     preferred_element_type=jnp.float32) / denom        # (B,H)
    return jnp.tanh(jnp.dot(pooled, proj_w,
                            preferred_element_type=jnp.float32) + proj_b)


def fused_kernel(ids1_ref, mask1_ref, ids2_ref, mask2_ref,
                 emb_ref, pw_ref, pb_ref, hw_ref, hb_ref, out_ref):
    """Full DSESiameseClassifier forward in one launch.

    ids*/mask* : (B, S) int32
    emb_ref    : (VOCAB, H) f32
    pw_ref     : (H, D) f32      pb_ref : (1, D) f32
    hw_ref     : (4*D, C_PAD) f32 (zero-padded)   hb_ref : (1, C_PAD) f32
    out_ref    : (B, C_PAD) f32   (lane-dense; first C columns are the logits)
    """
    emb_table = emb_ref[...]
    proj_w = pw_ref[...]
    proj_b = pb_ref[...]

    e1 = _encode(ids1_ref[...], mask1_ref[...].astype(jnp.float32),
                 emb_table, proj_w, proj_b)
    e2 = _encode(ids2_ref[...], mask2_ref[...].astype(jnp.float32),
                 emb_table, proj_w, proj_b)

    # Siamese head: single K = 4*D = 128 matmul on lane-packed features.
    feats = jnp.concatenate([e1, e2, jnp.abs(e1 - e2), e1 * e2], axis=-1)  # (B,4D)
    out_ref[...] = jnp.dot(feats, hw_ref[...],
                           preferred_element_type=jnp.float32) + hb_ref[...]


# -------------------- wrapper --------------------
def _vmem_spec():
    return pl.BlockSpec(memory_space=pltpu.MemorySpace.VMEM)


def dse_siamese_classifier(first_input_ids, first_input_mask,
                           second_input_ids, second_input_mask, params):
    """Forward pass matching DSESiameseClassifier.forward (single fused launch)."""
    padded_logits = pl.pallas_call(
        fused_kernel,
        out_shape=jax.ShapeDtypeStruct((B, C_PAD), jnp.float32),
        in_specs=[_vmem_spec()] * 9,
        out_specs=_vmem_spec(),
    )(first_input_ids, first_input_mask,
      second_input_ids, second_input_mask,
      params["emb_table"], params["proj_w"], params["proj_b"],
      params["head_w_cat"], params["head_b_pad"])
    return padded_logits[:, :C]


def prepare_params(emb_table, proj_w, proj_b, head_w, head_b):
    """Precompute kernel-friendly head weights (concat + lane padding) once."""
    head_w_cat = jnp.pad(head_w.reshape(4 * D, C), ((0, 0), (0, C_PAD - C)))
    head_b_pad = jnp.pad(head_b, ((0, 0), (0, C_PAD - C)))
    return {
        "emb_table": emb_table, "proj_w": proj_w, "proj_b": proj_b,
        "head_w": head_w, "head_b": head_b,
        "head_w_cat": head_w_cat, "head_b_pad": head_b_pad,
    }


# -------------------- pure-JAX reference (for correctness check) --------------------
def reference_forward(ids1, mask1, ids2, mask2, params):
    def encode(ids, mask):
        emb = jnp.take(params["emb_table"], ids, axis=0)
        m = mask.astype(jnp.float32)
        pooled = jnp.sum(emb * m[:, :, None], axis=1) / jnp.maximum(
            jnp.sum(m, axis=1, keepdims=True), 1.0)
        return jnp.tanh(pooled @ params["proj_w"] + params["proj_b"])

    e1 = encode(ids1, mask1)
    e2 = encode(ids2, mask2)
    w = params["head_w"]
    logits = (e1 @ w[0] + e2 @ w[1] + jnp.abs(e1 - e2) @ w[2]
              + (e1 * e2) @ w[3] + params["head_b"])
    return logits


# -------------------- main --------------------
if __name__ == "__main__":
    key = jax.random.PRNGKey(0)
    k_emb, k_pw, k_pb, k_hw, k_hb, k_ids1, k_ids2 = jax.random.split(key, 7)

    params = prepare_params(
        emb_table=jax.random.normal(k_emb, (VOCAB, H), jnp.float32) * 0.1,
        proj_w=jax.random.normal(k_pw, (H, D), jnp.float32) * 0.1,
        proj_b=jax.random.normal(k_pb, (1, D), jnp.float32) * 0.1,
        head_w=jax.random.normal(k_hw, (4, D, C), jnp.float32) * 0.1,
        head_b=jax.random.normal(k_hb, (1, C), jnp.float32) * 0.1,
    )

    first_input_ids = jax.random.randint(k_ids1, (B, S), 0, VOCAB, jnp.int32)
    second_input_ids = jax.random.randint(k_ids2, (B, S), 0, VOCAB, jnp.int32)
    # attention masks: sample 0 full length, sample 1 half padded (int32, no wrapper cast)
    first_input_mask = jnp.array(
        [[1] * S, [1] * (S // 2) + [0] * (S - S // 2)], dtype=jnp.int32)
    second_input_mask = jnp.array(
        [[1] * (S - 2) + [0] * 2, [1] * S], dtype=jnp.int32)

    logits = dse_siamese_classifier(first_input_ids, first_input_mask,
                                    second_input_ids, second_input_mask, params)
    logits = jax.block_until_ready(logits)

    ref = reference_forward(first_input_ids, first_input_mask,
                            second_input_ids, second_input_mask, params)
    np.testing.assert_allclose(np.asarray(logits), np.asarray(ref),
                               rtol=1e-3, atol=1e-3)

    print("KERNEL_OK")
</pallas_src>

<mosaic_0001>
module attributes {stable_mosaic.version = 11 : i64} {
  func.func @fused_kernel(%arg0: memref<2x8xi32, #tpu.memory_space<vmem>>, %arg1: memref<2x8xi32, #tpu.memory_space<vmem>>, %arg2: memref<2x8xi32, #tpu.memory_space<vmem>>, %arg3: memref<2x8xi32, #tpu.memory_space<vmem>>, %arg4: memref<64x32xf32, #tpu.memory_space<vmem>>, %arg5: memref<32x32xf32, #tpu.memory_space<vmem>>, %arg6: memref<1x32xf32, #tpu.memory_space<vmem>>, %arg7: memref<128x128xf32, #tpu.memory_space<vmem>>, %arg8: memref<1x128xf32, #tpu.memory_space<vmem>>, %arg9: memref<2x128xf32, #tpu.memory_space<vmem>>) attributes {dimension_semantics = [], scalar_prefetch = 0 : i64, scratch_operands = 0 : i64, tpu.core_type = #tpu.core_type<tc>} {
    %c0 = arith.constant 0 : index
    %c0_0 = arith.constant 0 : index
    %0 = vector.load %arg4[%c0, %c0_0] : memref<64x32xf32, #tpu.memory_space<vmem>>, vector<64x32xf32>
    %c0_1 = arith.constant 0 : index
    %c0_2 = arith.constant 0 : index
    %1 = vector.load %arg5[%c0_1, %c0_2] : memref<32x32xf32, #tpu.memory_space<vmem>>, vector<32x32xf32>
    %c0_3 = arith.constant 0 : index
    %c0_4 = arith.constant 0 : index
    %2 = vector.load %arg6[%c0_3, %c0_4] : memref<1x32xf32, #tpu.memory_space<vmem>>, vector<1x32xf32>
    %c0_5 = arith.constant 0 : index
    %c0_6 = arith.constant 0 : index
    %3 = vector.load %arg0[%c0_5, %c0_6] : memref<2x8xi32, #tpu.memory_space<vmem>>, vector<2x8xi32>
    %c0_7 = arith.constant 0 : index
    %c0_8 = arith.constant 0 : index
    %4 = vector.load %arg1[%c0_7, %c0_8] : memref<2x8xi32, #tpu.memory_space<vmem>>, vector<2x8xi32>
    %5 = arith.sitofp %4 : vector<2x8xi32> to vector<2x8xf32>
    %6 = tpu.iota {dimensions = array<i32: 2>} : vector<2x8x64xi32>
    %7 = vector.shape_cast %3 : vector<2x8xi32> to vector<2x8x1xi32>
    %8 = vector.broadcast %7 : vector<2x8x1xi32> to vector<2x8x64xi32>
    %9 = arith.cmpi eq, %8, %6 : vector<2x8x64xi32>
    %10 = arith.extui %9 : vector<2x8x64xi1> to vector<2x8x64xi32>
    %11 = arith.sitofp %10 : vector<2x8x64xi32> to vector<2x8x64xf32>
    %12 = vector.shape_cast %5 : vector<2x8xf32> to vector<2x8x1xf32>
    %13 = vector.broadcast %12 : vector<2x8x1xf32> to vector<2x8x64xf32>
    %14 = arith.mulf %11, %13 : vector<2x8x64xf32>
    %cst = arith.constant dense<0.000000e+00> : vector<2x64xf32>
    %15 = vector.multi_reduction <add>, %14, %cst [1] : vector<2x8x64xf32> to vector<2x64xf32>
    %cst_9 = arith.constant dense<0.000000e+00> : vector<2xf32>
    %16 = vector.multi_reduction <add>, %5, %cst_9 [1] : vector<2x8xf32> to vector<2xf32>
    %17 = vector.shape_cast %16 : vector<2xf32> to vector<2x1xf32>
    %cst_10 = arith.constant 1.000000e+00 : f32
    %18 = vector.broadcast %cst_10 : f32 to vector<2x1xf32>
    %19 = arith.maximumf %17, %18 : vector<2x1xf32>
    %cst_11 = arith.constant dense<0.000000e+00> : vector<2x32xf32>
    %20 = tpu.matmul %15, %0, %cst_11 {dimension_numbers = #tpu.dot_dimension_numbers<[1], [0], [0], [1], [0, 0, 1, 1], [], []>} : vector<2x64xf32>, vector<64x32xf32>, vector<2x32xf32> -> vector<2x32xf32>
    %21 = vector.broadcast %19 : vector<2x1xf32> to vector<2x32xf32>
    %22 = arith.divf %20, %21 : vector<2x32xf32>
    %cst_12 = arith.constant dense<0.000000e+00> : vector<2x32xf32>
    %23 = tpu.matmul %22, %1, %cst_12 {dimension_numbers = #tpu.dot_dimension_numbers<[1], [0], [0], [1], [0, 0, 1, 1], [], []>} : vector<2x32xf32>, vector<32x32xf32>, vector<2x32xf32> -> vector<2x32xf32>
    %24 = vector.broadcast %2 : vector<1x32xf32> to vector<2x32xf32>
    %25 = arith.addf %23, %24 : vector<2x32xf32>
    %26 = math.tanh %25 : vector<2x32xf32>
    %c0_13 = arith.constant 0 : index
    %c0_14 = arith.constant 0 : index
    %27 = vector.load %arg2[%c0_13, %c0_14] : memref<2x8xi32, #tpu.memory_space<vmem>>, vector<2x8xi32>
    %c0_15 = arith.constant 0 : index
    %c0_16 = arith.constant 0 : index
    %28 = vector.load %arg3[%c0_15, %c0_16] : memref<2x8xi32, #tpu.memory_space<vmem>>, vector<2x8xi32>
    %29 = arith.sitofp %28 : vector<2x8xi32> to vector<2x8xf32>
    %30 = tpu.iota {dimensions = array<i32: 2>} : vector<2x8x64xi32>
    %31 = vector.shape_cast %27 : vector<2x8xi32> to vector<2x8x1xi32>
    %32 = vector.broadcast %31 : vector<2x8x1xi32> to vector<2x8x64xi32>
    %33 = arith.cmpi eq, %32, %30 : vector<2x8x64xi32>
    %34 = arith.extui %33 : vector<2x8x64xi1> to vector<2x8x64xi32>
    %35 = arith.sitofp %34 : vector<2x8x64xi32> to vector<2x8x64xf32>
    %36 = vector.shape_cast %29 : vector<2x8xf32> to vector<2x8x1xf32>
    %37 = vector.broadcast %36 : vector<2x8x1xf32> to vector<2x8x64xf32>
    %38 = arith.mulf %35, %37 : vector<2x8x64xf32>
    %cst_17 = arith.constant dense<0.000000e+00> : vector<2x64xf32>
    %39 = vector.multi_reduction <add>, %38, %cst_17 [1] : vector<2x8x64xf32> to vector<2x64xf32>
    %cst_18 = arith.constant dense<0.000000e+00> : vector<2xf32>
    %40 = vector.multi_reduction <add>, %29, %cst_18 [1] : vector<2x8xf32> to vector<2xf32>
    %41 = vector.shape_cast %40 : vector<2xf32> to vector<2x1xf32>
    %cst_19 = arith.constant 1.000000e+00 : f32
    %42 = vector.broadcast %cst_19 : f32 to vector<2x1xf32>
    %43 = arith.maximumf %41, %42 : vector<2x1xf32>
    %cst_20 = arith.constant dense<0.000000e+00> : vector<2x32xf32>
    %44 = tpu.matmul %39, %0, %cst_20 {dimension_numbers = #tpu.dot_dimension_numbers<[1], [0], [0], [1], [0, 0, 1, 1], [], []>} : vector<2x64xf32>, vector<64x32xf32>, vector<2x32xf32> -> vector<2x32xf32>
    %45 = vector.broadcast %43 : vector<2x1xf32> to vector<2x32xf32>
    %46 = arith.divf %44, %45 : vector<2x32xf32>
    %cst_21 = arith.constant dense<0.000000e+00> : vector<2x32xf32>
    %47 = tpu.matmul %46, %1, %cst_21 {dimension_numbers = #tpu.dot_dimension_numbers<[1], [0], [0], [1], [0, 0, 1, 1], [], []>} : vector<2x32xf32>, vector<32x32xf32>, vector<2x32xf32> -> vector<2x32xf32>
    %48 = vector.broadcast %2 : vector<1x32xf32> to vector<2x32xf32>
    %49 = arith.addf %47, %48 : vector<2x32xf32>
    %50 = math.tanh %49 : vector<2x32xf32>
    %51 = arith.subf %26, %50 : vector<2x32xf32>
    %52 = math.absf %51 : vector<2x32xf32>
    %53 = arith.mulf %26, %50 : vector<2x32xf32>
    %54 = tpu.concatenate %26, %50, %52, %53 in 1 : vector<2x32xf32>, vector<2x32xf32>, vector<2x32xf32>, vector<2x32xf32> -> vector<2x128xf32>
    %c0_22 = arith.constant 0 : index
    %c0_23 = arith.constant 0 : index
    %55 = vector.load %arg7[%c0_22, %c0_23] : memref<128x128xf32, #tpu.memory_space<vmem>>, vector<128x128xf32>
    %cst_24 = arith.constant dense<0.000000e+00> : vector<2x128xf32>
    %56 = tpu.matmul %54, %55, %cst_24 {dimension_numbers = #tpu.dot_dimension_numbers<[1], [0], [0], [1], [0, 0, 1, 1], [], []>} : vector<2x128xf32>, vector<128x128xf32>, vector<2x128xf32> -> vector<2x128xf32>
    %c0_25 = arith.constant 0 : index
    %c0_26 = arith.constant 0 : index
    %57 = vector.load %arg8[%c0_25, %c0_26] : memref<1x128xf32, #tpu.memory_space<vmem>>, vector<1x128xf32>
    %58 = vector.broadcast %57 : vector<1x128xf32> to vector<2x128xf32>
    %59 = arith.addf %56, %58 : vector<2x128xf32>
    %c0_27 = arith.constant 0 : index
    %c0_28 = arith.constant 0 : index
    %60 = vector.load %arg9[%c0_27, %c0_28] : memref<2x128xf32, #tpu.memory_space<vmem>>, vector<2x128xf32>
    tpu.vector_store %arg9[%c0_27, %c0_28], %59 {strides = array<i32>} : memref<2x128xf32, #tpu.memory_space<vmem>>, vector<2x128xf32>,
    return
  }
}

</mosaic_0001>

<llo_original>
// kernel: tpu_custom_call.1
$region0: #{tpu_custom_call.1}
  #allocation0 [shape = 'u32[]', space=smem, size = 0x4, offset = 0x4, fixed_abs, tag = 'smem constant byte address 0x4 - core index']
  #allocation1 [shape = 'u32[144,128]{1,0:T(1,128)}', space=vmem, size = 0x12000, scoped, tag = 'internal scratch']
  %s0 = inlined_call_operand.vmem [shape: s32[2,8], index: 0, kind: input, shape index: {}]
  %s1 = inlined_call_operand.vmem [shape: s32[2,8], index: 1, kind: input, shape index: {}]
  %s2 = inlined_call_operand.vmem [shape: s32[2,8], index: 2, kind: input, shape index: {}]
  %s3 = inlined_call_operand.vmem [shape: s32[2,8], index: 3, kind: input, shape index: {}]
  %s4 = inlined_call_operand.vmem [shape: f32[64,32], index: 4, kind: input, shape index: {}]
  %s5 = inlined_call_operand.vmem [shape: f32[32,32], index: 5, kind: input, shape index: {}]
  %s6 = inlined_call_operand.vmem [shape: f32[1,32], index: 6, kind: input, shape index: {}]
  %s7 = inlined_call_operand.hbm [shape: f32[128,128], index: 7, kind: input, shape index: {}]
  %s8 = inlined_call_operand.vmem [shape: f32[1,128], index: 8, kind: input, shape index: {}]
  %s9 = inlined_call_operand.hbm [shape: f32[2,128], index: 9, kind: output, shape index: {}]
  %s10 = sld [smem:[#allocation0]]
  $region50: #{tpu_custom_call.1} parent=0
    _
  %s12 = ssub.s32 1, %s10
  %s13 = scalar_select 0, %s12, %s10
  $region1: #{tpu_custom_call.1} parent=0
    #allocation2 [shape = 'u8[65536]{0}', space=vmem, size = 0x10000, scoped, tag = 'input window, operand 7, single buffered']
    #allocation3 [shape = 's32[1]{0}', space=sflag, size = 0x4, scoped, tag = 'scoped memory for tpu_custom_call.1']
    #allocation4 [shape = 's32[1]{0}', space=sflag, size = 0x4, scoped, tag = 'scoped memory for tpu_custom_call.1']
    #allocation5 [shape = 'u8[1024]{0}', space=vmem, size = 0x400, scoped, tag = 'output window, operand 0, single buffered']
    %14 = vsyncpa [#allocation3], 0
    %15 = vsyncpa [#allocation4], 0
    // Predicated region
    $region2: #{tpu_custom_call.1} parent=1 // pred_check
      _
    $region3: #{tpu_custom_call.1} parent=1 // pred_check_branch
      %17 = sbr.rel (0) target = $region5
    $region4: #{tpu_custom_call.1} parent=1 // pred_region
      _
    $region5: #{tpu_custom_call.1} parent=1 // pred_fallthru
      _
    // Predicated region
    $region6: #{tpu_custom_call.1} parent=1 // pred_check
      _
    $region7: #{tpu_custom_call.1} parent=1 // pred_check_branch
      %19 = sbr.rel (0) target = $region9
    $region8: #{tpu_custom_call.1} parent=1 // pred_region
      _
    $region9: #{tpu_custom_call.1} parent=1 // pred_fallthru
      _
    // Predicated region
    $region10: #{tpu_custom_call.1} parent=1 // pred_check
      _
    $region11: #{tpu_custom_call.1} parent=1 // pred_check_branch
      %21 = sbr.rel (0) target = $region13
    $region12: #{tpu_custom_call.1} parent=1 // pred_region
      _
    $region13: #{tpu_custom_call.1} parent=1 // pred_fallthru
      _
    // Predicated region
    $region14: #{tpu_custom_call.1} parent=1 // pred_check
      _
    $region15: #{tpu_custom_call.1} parent=1 // pred_check_branch
      %23 = sbr.rel (0) target = $region17
    $region16: #{tpu_custom_call.1} parent=1 // pred_region
      _
    $region17: #{tpu_custom_call.1} parent=1 // pred_fallthru
      _
    // Predicated region
    $region18: #{tpu_custom_call.1} parent=1 // pred_check
      _
    $region19: #{tpu_custom_call.1} parent=1 // pred_check_branch
      %25 = sbr.rel (0) target = $region21
    $region20: #{tpu_custom_call.1} parent=1 // pred_region
      _
    $region21: #{tpu_custom_call.1} parent=1 // pred_fallthru
      _
    // Predicated region
    $region22: #{tpu_custom_call.1} parent=1 // pred_check
      _
    $region23: #{tpu_custom_call.1} parent=1 // pred_check_branch
      %27 = sbr.rel (0) target = $region25
    $region24: #{tpu_custom_call.1} parent=1 // pred_region
      _
    $region25: #{tpu_custom_call.1} parent=1 // pred_fallthru
      _
    // Predicated region
    $region26: #{tpu_custom_call.1} parent=1 // pred_check
      _
    $region27: #{tpu_custom_call.1} parent=1 // pred_check_branch
      %29 = sbr.rel (0) target = $region29
    $region28: #{tpu_custom_call.1} parent=1 // pred_region
      _
    $region29: #{tpu_custom_call.1} parent=1 // pred_fallthru
      _
    // Predicated region
    $region30: #{tpu_custom_call.1} parent=1 // pred_check
      _
    $region31: #{tpu_custom_call.1} parent=1 // pred_check_branch
      %31 = sbr.rel (0) target = $region33
    $region32: #{tpu_custom_call.1} parent=1 // pred_region
      %s33 = ssub.s32 2048, 2048
      %34 = vsyncadd [#allocation3], %s33
      %s35 = sshll.u32 [#allocation2], 4
      %s36 = int_to_ptr.vmem [resolvable:$true] %s35
      %41 = dma.hbm_to_vmem [thread:$0]  %s7, 2048, %s36, [#allocation3], 128, 128, 8
    $region33: #{tpu_custom_call.1} parent=1 // pred_fallthru
      _
    // Predicated region
    $region34: #{tpu_custom_call.1} parent=1 // pred_check
      _
    $region35: #{tpu_custom_call.1} parent=1 // pred_check_branch
      %43 = sbr.rel (0) target = $region37
    $region36: #{tpu_custom_call.1} parent=1 // pred_region
      _
    $region37: #{tpu_custom_call.1} parent=1 // pred_fallthru
      _
    // Predicated region
    $region38: #{tpu_custom_call.1} parent=1 // pred_check
      _
    $region39: #{tpu_custom_call.1} parent=1 // pred_check_branch
      %45 = sbr.rel (0) target = $region41
    $region40: #{tpu_custom_call.1} parent=1 // pred_region
      %46 = dma.done [#allocation3], 2048
    $region41: #{tpu_custom_call.1} parent=1 // pred_fallthru
      _
    %v47 = vld [vmem:[%s4] sm:$0xff]
    %v48 = vld [vmem:[%s4 + $0x8] sm:$0xff]
    %v49 = vld [vmem:[%s4 + $0x10] sm:$0xff]
    %v50 = vld [vmem:[%s4 + $0x18] sm:$0xff]
    %v51 = vld [vmem:[%s4 + $0x20] sm:$0xff]
    %v52 = vld [vmem:[%s4 + $0x28] sm:$0xff]
    %v53 = vld [vmem:[%s4 + $0x30] sm:$0xff]
    %v54 = vld [vmem:[%s4 + $0x38] sm:$0xff]
    %v55 = vld [vmem:[%s5] sm:$0xff]
    %v56 = vld [vmem:[%s5 + $0x8] sm:$0xff]
    %v57 = vld [vmem:[%s5 + $0x10] sm:$0xff]
    %v58 = vld [vmem:[%s5 + $0x18] sm:$0xff]
    %v59 = vld [vmem:[%s6] sm:$0x1]
    %v60 = vld [vmem:[%s0] sm:$0x3]
    %v61 = vld [vmem:[%s1] sm:$0x3]
    %v62 = vcvt.s32.f32 %v61
    %v63 = vlaneseq
    %v64 = vand.u32 %v63, 127
    %v65 = vlaneseq
    %v66 = vshrl.u32 %v65, 7
    %v67 = vsub.s32 0, %v66
    %v68 = vrot.slane %v60, %v67
    %70 = vbcast.lane.b32.xlu0 %v68, 256
    %v71 = vpop.permute.xlu0 %70
    %v72 = vlaneseq
    %v73 = vshrl.u32 %v72, 7
    %v74 = vsub.s32 1, %v73
    %v75 = vrot.slane %v60, %v74
    %77 = vbcast.lane.b32.xlu0 %v75, 256
    %v78 = vpop.permute.xlu0 %77
    %vm79 = vcmp.eq.s32.totalorder %v71, %v64
    %vm80 = vcmp.eq.s32.totalorder %v78, %v64
    %v81 = vsel %vm79, 1, 0
    %v82 = vsel %vm80, 1, 0
    %v83 = vcvt.s32.f32 %v81
    %v84 = vcvt.s32.f32 %v82
    %v85 = vlaneseq
    %v86 = vshrl.u32 %v85, 7
    %v87 = vsub.s32 0, %v86
    %v88 = vrot.slane %v62, %v87
    %90 = vbcast.lane.b32.xlu0 %v88, 256
    %v91 = vpop.permute.xlu0 %90
    %v92 = vlaneseq
    %v93 = vshrl.u32 %v92, 7
    %v94 = vsub.s32 1, %v93
    %v95 = vrot.slane %v62, %v94
    %97 = vbcast.lane.b32.xlu0 %v95, 256
    %v98 = vpop.permute.xlu0 %97
    %v99 = vmul.f32 %v83, %v91
    %v100 = vmul.f32 %v84, %v98
    %vm101 = vcmask 523264
    %v102 = vsel %vm101, %v99, 0.0
    %v103 = vrot.slane %v102, 4
    %v104 = vadd.f32 %v102, %v103
    %v105 = vrot.slane %v104, 2
    %v106 = vadd.f32 %v104, %v105
    %v107 = vrot.slane %v106, 1
    %v108 = vadd.f32 %v106, %v107
    %v109 = vsel %vm101, %v100, 0.0
    %v110 = vrot.slane %v109, 4
    %v111 = vadd.f32 %v109, %v110
    %v112 = vrot.slane %v111, 2
    %v113 = vadd.f32 %v111, %v112
    %v114 = vrot.slane %v113, 1
    %v115 = vadd.f32 %v113, %v114
    %vm116 = vcmask 58368
    %v117 = vsel %vm116, %v62, 0.0
    %118 = vadd.xlane.f32.xlu0 %v117
    %v119 = vpop.xlane.xlu0 %118
    %v120 = vmax.f32 %v119, 1.0
    %vm123 = vcmask 1041409
    %v124 = vsel %vm123, %v115, %v108
    %v125 = vsel %vm101, %v124, 0
    %127 = vmatprep.subr.mxu0 0.0
    %128 = vmatpush1.msra.mxu0 %v47
    %129 = vmatprep.subr.mxu0 0.0
    %130 = vmatpush1.msra.mxu0 %v48
    %131 = vmatprep.subr.mxu0 0.0
    %132 = vmatpush1.msra.mxu0 %v49
    %133 = vmatprep.subr.mxu0 0.0
    %134 = vmatpush1.msra.mxu0 %v50
    %135 = vmatprep.subr.mxu0 0.0
    %136 = vmatpush1.msra.mxu0 %v51
    %137 = vmatprep.subr.mxu0 0.0
    %138 = vmatpush1.msra.mxu0 %v52
    %139 = vmatprep.subr.mxu0 0.0
    %140 = vmatpush1.msra.mxu0 %v53
    %141 = vmatprep.subr.mxu0 0.0
    %142 = vmatpush1.msra.mxu0 %v54
    %143 = vmatprep.subr.mxu0 0.0
    %144 = vmatpush1.msra.mxu0 0.0
    %145 = vmatprep.subr.mxu0 0.0
    %146 = vmatpush1.msra.mxu0 0.0
    %147 = vmatprep.subr.mxu0 0.0
    %148 = vmatpush1.msra.mxu0 0.0
    %149 = vmatprep.subr.mxu0 0.0
    %150 = vmatpush1.msra.mxu0 0.0
    %151 = vmatprep.subr.mxu0 0.0
    %152 = vmatpush1.msra.mxu0 0.0
    %153 = vmatprep.subr.mxu0 0.0
    %154 = vmatpush1.msra.mxu0 0.0
    %155 = vmatprep.subr.mxu0 0.0
    %156 = vmatpush1.msra.mxu0 0.0
    %157 = vmatprep.subr.mxu0 0.0
    %158 = vmatpush1.msra.mxu0 0.0
    %159 = vmatprep.subr.mxu0 0.0
    %160 = vmatpush1.msra.mxu0 0.0
    %161 = vmatprep.subr.mxu0 0.0
    %162 = vmatpush1.msra.mxu0 0.0
    %163 = vmatprep.subr.mxu0 0.0
    %164 = vmatpush1.msra.mxu0 0.0
    %165 = vmatprep.subr.mxu0 0.0
    %166 = vmatpush1.msra.mxu0 0.0
    %167 = vmatprep.subr.mxu0 0.0
    %168 = vmatpush1.msra.mxu0 0.0
    %169 = vmatprep.subr.mxu0 0.0
    %170 = vmatpush1.msra.mxu0 0.0
    %171 = vmatprep.subr.mxu0 0.0
    %172 = vmatpush1.msra.mxu0 0.0
    %173 = vmatprep.subr.mxu0 0.0
    %174 = vmatpush1.msra.mxu0 0.0
    %175 = vmatprep.subr.mxu0 0.0
    %176 = vmatpush1.msra.mxu0 0.0
    %177 = vmatprep.subr.mxu0 0.0
    %178 = vmatpush1.msra.mxu0 0.0
    %179 = vmatprep.subr.mxu0 0.0
    %180 = vmatpush1.msra.mxu0 0.0
    %181 = vmatprep.subr.mxu0 0.0
    %182 = vmatpush1.msra.mxu0 0.0
    %183 = vmatprep.subr.mxu0 0.0
    %184 = vmatpush1.msra.mxu0 0.0
    %185 = vmatprep.subr.mxu0 0.0
    %186 = vmatpush1.msra.mxu0 0.0
    %187 = vmatprep.subr.mxu0 0.0
    %188 = vmatpush1.msra.mxu0 0.0
    %189 = vmatprep.subr.mxu0 0.0
    %190 = vmatpush1.msra.mxu0 0.0
    %191 = vmatprep.mubr.f32.mxu0 0.0
    %192 = vmatmul.mubr.f32.gmra.mrb[0].mxu0 %v125
    %v193 = vpop.f32.mrb[0].mxu0
    %v194 = vadd.f32 0.0, %v193
    %v195 = vpop.f32.mrb[0].mxu0
    %196 = vdwg.mxu0
    %v197 = vrcp.pop %v120
    %v198 = vmul.f32 %v194, %v197
    %v200 = vlaneseq
    %v201 = vshrl.u32 %v200, 7
    %v202 = vsub.s32 0, %v201
    %v203 = vrot.slane %v59, %v202
    %vm205 = vcmask 261120
    %v207 = vsel %vm205, %v198, 0
    %209 = vmatprep.subr.mxu0 0.0
    %210 = vmatpush1.msra.mxu0 %v55
    %211 = vmatprep.subr.mxu0 0.0
    %212 = vmatpush1.msra.mxu0 %v56
    %213 = vmatprep.subr.mxu0 0.0
    %214 = vmatpush1.msra.mxu0 %v57
    %215 = vmatprep.subr.mxu0 0.0
    %216 = vmatpush1.msra.mxu0 %v58
    %217 = vmatprep.subr.mxu0 0.0
    %218 = vmatpush1.msra.mxu0 0.0
    %219 = vmatprep.subr.mxu0 0.0
    %220 = vmatpush1.msra.mxu0 0.0
    %221 = vmatprep.subr.mxu0 0.0
    %222 = vmatpush1.msra.mxu0 0.0
    %223 = vmatprep.subr.mxu0 0.0
    %224 = vmatpush1.msra.mxu0 0.0
    %225 = vmatprep.subr.mxu0 0.0
    %226 = vmatpush1.msra.mxu0 0.0
    %227 = vmatprep.subr.mxu0 0.0
    %228 = vmatpush1.msra.mxu0 0.0
    %229 = vmatprep.subr.mxu0 0.0
    %230 = vmatpush1.msra.mxu0 0.0
    %231 = vmatprep.subr.mxu0 0.0
    %232 = vmatpush1.msra.mxu0 0.0
    %233 = vmatprep.subr.mxu0 0.0
    %234 = vmatpush1.msra.mxu0 0.0
    %235 = vmatprep.subr.mxu0 0.0
    %236 = vmatpush1.msra.mxu0 0.0
    %237 = vmatprep.subr.mxu0 0.0
    %238 = vmatpush1.msra.mxu0 0.0
    %239 = vmatprep.subr.mxu0 0.0
    %240 = vmatpush1.msra.mxu0 0.0
    %241 = vmatprep.subr.mxu0 0.0
    %242 = vmatpush1.msra.mxu0 0.0
    %243 = vmatprep.subr.mxu0 0.0
    %244 = vmatpush1.msra.mxu0 0.0
    %245 = vmatprep.subr.mxu0 0.0
    %246 = vmatpush1.msra.mxu0 0.0
    %247 = vmatprep.subr.mxu0 0.0
    %248 = vmatpush1.msra.mxu0 0.0
    %249 = vmatprep.subr.mxu0 0.0
    %250 = vmatpush1.msra.mxu0 0.0
    %251 = vmatprep.subr.mxu0 0.0
    %252 = vmatpush1.msra.mxu0 0.0
    %253 = vmatprep.subr.mxu0 0.0
    %254 = vmatpush1.msra.mxu0 0.0
    %255 = vmatprep.subr.mxu0 0.0
    %256 = vmatpush1.msra.mxu0 0.0
    %257 = vmatprep.subr.mxu0 0.0
    %258 = vmatpush1.msra.mxu0 0.0
    %259 = vmatprep.subr.mxu0 0.0
    %260 = vmatpush1.msra.mxu0 0.0
    %261 = vmatprep.subr.mxu0 0.0
    %262 = vmatpush1.msra.mxu0 0.0
    %263 = vmatprep.subr.mxu0 0.0
    %264 = vmatpush1.msra.mxu0 0.0
    %265 = vmatprep.subr.mxu0 0.0
    %266 = vmatpush1.msra.mxu0 0.0
    %267 = vmatprep.subr.mxu0 0.0
    %268 = vmatpush1.msra.mxu0 0.0
    %269 = vmatprep.subr.mxu0 0.0
    %270 = vmatpush1.msra.mxu0 0.0
    %271 = vmatprep.subr.mxu0 0.0
    %272 = vmatpush1.msra.mxu0 0.0
    %273 = vmatprep.mubr.f32.mxu0 0.0
    %274 = vmatmul.mubr.f32.gmra.mrb[0].mxu0 %v207
    %v275 = vpop.f32.mrb[0].mxu0
    %v276 = vadd.f32 %v203, %v275
    %v277 = vpop.f32.mrb[0].mxu0
    %278 = vdwg.mxu0
    %v279 = vtanh.pop %v276
    %v280 = vld [vmem:[%s2] sm:$0x3]
    %v281 = vld [vmem:[%s3] sm:$0x3]
    %v282 = vcvt.s32.f32 %v281
    %v283 = vlaneseq
    %v284 = vshrl.u32 %v283, 7
    %v285 = vsub.s32 0, %v284
    %v286 = vrot.slane %v280, %v285
    %288 = vbcast.lane.b32.xlu0 %v286, 256
    %v289 = vpop.permute.xlu0 %288
    %v290 = vlaneseq
    %v291 = vshrl.u32 %v290, 7
    %v292 = vsub.s32 1, %v291
    %v293 = vrot.slane %v280, %v292
    %295 = vbcast.lane.b32.xlu0 %v293, 256
    %v296 = vpop.permute.xlu0 %295
    %vm297 = vcmp.eq.s32.totalorder %v289, %v64
    %vm298 = vcmp.eq.s32.totalorder %v296, %v64
    %v299 = vsel %vm297, 1, 0
    %v300 = vsel %vm298, 1, 0
    %v301 = vcvt.s32.f32 %v299
    %v302 = vcvt.s32.f32 %v300
    %v303 = vlaneseq
    %v304 = vshrl.u32 %v303, 7
    %v305 = vsub.s32 0, %v304
    %v306 = vrot.slane %v282, %v305
    %308 = vbcast.lane.b32.xlu0 %v306, 256
    %v309 = vpop.permute.xlu0 %308
    %v310 = vlaneseq
    %v311 = vshrl.u32 %v310, 7
    %v312 = vsub.s32 1, %v311
    %v313 = vrot.slane %v282, %v312
    %315 = vbcast.lane.b32.xlu0 %v313, 256
    %v316 = vpop.permute.xlu0 %315
    %v317 = vmul.f32 %v301, %v309
    %v318 = vmul.f32 %v302, %v316
    %v319 = vsel %vm101, %v317, 0.0
    %v320 = vrot.slane %v319, 4
    %v321 = vadd.f32 %v319, %v320
    %v322 = vrot.slane %v321, 2
    %v323 = vadd.f32 %v321, %v322
    %v324 = vrot.slane %v323, 1
    %v325 = vadd.f32 %v323, %v324
    %v326 = vsel %vm101, %v318, 0.0
    %v327 = vrot.slane %v326, 4
    %v328 = vadd.f32 %v326, %v327
    %v329 = vrot.slane %v328, 2
    %v330 = vadd.f32 %v328, %v329
    %v331 = vrot.slane %v330, 1
    %v332 = vadd.f32 %v330, %v331
    %v333 = vsel %vm116, %v282, 0.0
    %334 = vadd.xlane.f32.xlu0 %v333
    %v335 = vpop.xlane.xlu0 %334
    %v336 = vmax.f32 %v335, 1.0
    %v339 = vsel %vm123, %v332, %v325
    %v340 = vsel %vm101, %v339, 0
    %342 = vmatprep.subr.mxu0 0.0
    %343 = vmatpush1.msra.mxu0 %v47
    %344 = vmatprep.subr.mxu0 0.0
    %345 = vmatpush1.msra.mxu0 %v48
    %346 = vmatprep.subr.mxu0 0.0
    %347 = vmatpush1.msra.mxu0 %v49
    %348 = vmatprep.subr.mxu0 0.0
    %349 = vmatpush1.msra.mxu0 %v50
    %350 = vmatprep.subr.mxu0 0.0
    %351 = vmatpush1.msra.mxu0 %v51
    %352 = vmatprep.subr.mxu0 0.0
    %353 = vmatpush1.msra.mxu0 %v52
    %354 = vmatprep.subr.mxu0 0.0
    %355 = vmatpush1.msra.mxu0 %v53
    %356 = vmatprep.subr.mxu0 0.0
    %357 = vmatpush1.msra.mxu0 %v54
    %358 = vmatprep.subr.mxu0 0.0
    %359 = vmatpush1.msra.mxu0 0.0
    %360 = vmatprep.subr.mxu0 0.0
    %361 = vmatpush1.msra.mxu0 0.0
    %362 = vmatprep.subr.mxu0 0.0
    %363 = vmatpush1.msra.mxu0 0.0
    %364 = vmatprep.subr.mxu0 0.0
    %365 = vmatpush1.msra.mxu0 0.0
    %366 = vmatprep.subr.mxu0 0.0
    %367 = vmatpush1.msra.mxu0 0.0
    %368 = vmatprep.subr.mxu0 0.0
    %369 = vmatpush1.msra.mxu0 0.0
    %370 = vmatprep.subr.mxu0 0.0
    %371 = vmatpush1.msra.mxu0 0.0
    %372 = vmatprep.subr.mxu0 0.0
    %373 = vmatpush1.msra.mxu0 0.0
    %374 = vmatprep.subr.mxu0 0.0
    %375 = vmatpush1.msra.mxu0 0.0
    %376 = vmatprep.subr.mxu0 0.0
    %377 = vmatpush1.msra.mxu0 0.0
    %378 = vmatprep.subr.mxu0 0.0
    %379 = vmatpush1.msra.mxu0 0.0
    %380 = vmatprep.subr.mxu0 0.0
    %381 = vmatpush1.msra.mxu0 0.0
    %382 = vmatprep.subr.mxu0 0.0
    %383 = vmatpush1.msra.mxu0 0.0
    %384 = vmatprep.subr.mxu0 0.0
    %385 = vmatpush1.msra.mxu0 0.0
    %386 = vmatprep.subr.mxu0 0.0
    %387 = vmatpush1.msra.mxu0 0.0
    %388 = vmatprep.subr.mxu0 0.0
    %389 = vmatpush1.msra.mxu0 0.0
    %390 = vmatprep.subr.mxu0 0.0
    %391 = vmatpush1.msra.mxu0 0.0
    %392 = vmatprep.subr.mxu0 0.0
    %393 = vmatpush1.msra.mxu0 0.0
    %394 = vmatprep.subr.mxu0 0.0
    %395 = vmatpush1.msra.mxu0 0.0
    %396 = vmatprep.subr.mxu0 0.0
    %397 = vmatpush1.msra.mxu0 0.0
    %398 = vmatprep.subr.mxu0 0.0
    %399 = vmatpush1.msra.mxu0 0.0
    %400 = vmatprep.subr.mxu0 0.0
    %401 = vmatpush1.msra.mxu0 0.0
    %402 = vmatprep.subr.mxu0 0.0
    %403 = vmatpush1.msra.mxu0 0.0
    %404 = vmatprep.subr.mxu0 0.0
    %405 = vmatpush1.msra.mxu0 0.0
    %406 = vmatprep.mubr.f32.mxu0 0.0
    %407 = vmatmul.mubr.f32.gmra.mrb[0].mxu0 %v340
    %v408 = vpop.f32.mrb[0].mxu0
    %v409 = vadd.f32 0.0, %v408
    %v410 = vpop.f32.mrb[0].mxu0
    %411 = vdwg.mxu0
    %v412 = vrcp.pop %v336
    %v413 = vmul.f32 %v409, %v412
    %v415 = vsel %vm205, %v413, 0
    %417 = vmatprep.subr.mxu0 0.0
    %418 = vmatpush1.msra.mxu0 %v55
    %419 = vmatprep.subr.mxu0 0.0
    %420 = vmatpush1.msra.mxu0 %v56
    %421 = vmatprep.subr.mxu0 0.0
    %422 = vmatpush1.msra.mxu0 %v57
    %423 = vmatprep.subr.mxu0 0.0
    %424 = vmatpush1.msra.mxu0 %v58
    %425 = vmatprep.subr.mxu0 0.0
    %426 = vmatpush1.msra.mxu0 0.0
    %427 = vmatprep.subr.mxu0 0.0
    %428 = vmatpush1.msra.mxu0 0.0
    %429 = vmatprep.subr.mxu0 0.0
    %430 = vmatpush1.msra.mxu0 0.0
    %431 = vmatprep.subr.mxu0 0.0
    %432 = vmatpush1.msra.mxu0 0.0
    %433 = vmatprep.subr.mxu0 0.0
    %434 = vmatpush1.msra.mxu0 0.0
    %435 = vmatprep.subr.mxu0 0.0
    %436 = vmatpush1.msra.mxu0 0.0
    %437 = vmatprep.subr.mxu0 0.0
    %438 = vmatpush1.msra.mxu0 0.0
    %439 = vmatprep.subr.mxu0 0.0
    %440 = vmatpush1.msra.mxu0 0.0
    %441 = vmatprep.subr.mxu0 0.0
    %442 = vmatpush1.msra.mxu0 0.0
    %443 = vmatprep.subr.mxu0 0.0
    %444 = vmatpush1.msra.mxu0 0.0
    %445 = vmatprep.subr.mxu0 0.0
    %446 = vmatpush1.msra.mxu0 0.0
    %447 = vmatprep.subr.mxu0 0.0
    %448 = vmatpush1.msra.mxu0 0.0
    %449 = vmatprep.subr.mxu0 0.0
    %450 = vmatpush1.msra.mxu0 0.0
    %451 = vmatprep.subr.mxu0 0.0
    %452 = vmatpush1.msra.mxu0 0.0
    %453 = vmatprep.subr.mxu0 0.0
    %454 = vmatpush1.msra.mxu0 0.0
    %455 = vmatprep.subr.mxu0 0.0
    %456 = vmatpush1.msra.mxu0 0.0
    %457 = vmatprep.subr.mxu0 0.0
    %458 = vmatpush1.msra.mxu0 0.0
    %459 = vmatprep.subr.mxu0 0.0
    %460 = vmatpush1.msra.mxu0 0.0
    %461 = vmatprep.subr.mxu0 0.0
    %462 = vmatpush1.msra.mxu0 0.0
    %463 = vmatprep.subr.mxu0 0.0
    %464 = vmatpush1.msra.mxu0 0.0
    %465 = vmatprep.subr.mxu0 0.0
    %466 = vmatpush1.msra.mxu0 0.0
    %467 = vmatprep.subr.mxu0 0.0
    %468 = vmatpush1.msra.mxu0 0.0
    %469 = vmatprep.subr.mxu0 0.0
    %470 = vmatpush1.msra.mxu0 0.0
    %471 = vmatprep.subr.mxu0 0.0
    %472 = vmatpush1.msra.mxu0 0.0
    %473 = vmatprep.subr.mxu0 0.0
    %474 = vmatpush1.msra.mxu0 0.0
    %475 = vmatprep.subr.mxu0 0.0
    %476 = vmatpush1.msra.mxu0 0.0
    %477 = vmatprep.subr.mxu0 0.0
    %478 = vmatpush1.msra.mxu0 0.0
    %479 = vmatprep.subr.mxu0 0.0
    %480 = vmatpush1.msra.mxu0 0.0
    %481 = vmatprep.mubr.f32.mxu0 0.0
    %482 = vmatmul.mubr.f32.gmra.mrb[0].mxu0 %v415
    %v483 = vpop.f32.mrb[0].mxu0
    %v484 = vadd.f32 %v203, %v483
    %v485 = vpop.f32.mrb[0].mxu0
    %486 = vdwg.mxu0
    %v487 = vtanh.pop %v484
    %v488 = vsub.f32 %v279, %v487
    %v489 = vand.u32 2147483647, %v488
    %v490 = vmul.f32 %v279, %v487
    %492 = vrot.lane.b32.xlu0 %v487, 32
    %v493 = vpop.permute.xlu0 %492
    %496 = vrot.lane.b32.xlu0 %v489, 64
    %v497 = vpop.permute.xlu0 %496
    %500 = vrot.lane.b32.xlu0 %v490, 96
    %v501 = vpop.permute.xlu0 %500
    %v503 = vsel %vm205, %v279, %v493
    %v504 = vsel %vm101, %v503, %v497
    %vm505 = vcmask 785408
    %v506 = vsel %vm505, %v504, %v501
    %v507 = vld [vmem:[#allocation2] sm:$0xff]
    %v508 = vld [vmem:[#allocation2 + $0x8] sm:$0xff]
    %v509 = vld [vmem:[#allocation2 + $0x10] sm:$0xff]
    %v510 = vld [vmem:[#allocation2 + $0x18] sm:$0xff]
    %v511 = vld [vmem:[#allocation2 + $0x20] sm:$0xff]
    %v512 = vld [vmem:[#allocation2 + $0x28] sm:$0xff]
    %v513 = vld [vmem:[#allocation2 + $0x30] sm:$0xff]
    %v514 = vld [vmem:[#allocation2 + $0x38] sm:$0xff]
    %v515 = vld [vmem:[#allocation2 + $0x40] sm:$0xff]
    %v516 = vld [vmem:[#allocation2 + $0x48] sm:$0xff]
    %v517 = vld [vmem:[#allocation2 + $0x50] sm:$0xff]
    %v518 = vld [vmem:[#allocation2 + $0x58] sm:$0xff]
    %v519 = vld [vmem:[#allocation2 + $0x60] sm:$0xff]
    %v520 = vld [vmem:[#allocation2 + $0x68] sm:$0xff]
    %v521 = vld [vmem:[#allocation2 + $0x70] sm:$0xff]
    %v522 = vld [vmem:[#allocation2 + $0x78] sm:$0xff]
    %v523 = vld [vmem:[%s8] sm:$0x1]
    %v525 = vlaneseq
    %v526 = vshrl.u32 %v525, 7
    %v527 = vsub.s32 0, %v526
    %v528 = vrot.slane %v523, %v527
    %530 = vmatprep.subr.mxu0 0.0
    %531 = vmatpush1.msra.mxu0 %v507
    %532 = vmatprep.subr.mxu0 0.0
    %533 = vmatpush1.msra.mxu0 %v508
    %534 = vmatprep.subr.mxu0 0.0
    %535 = vmatpush1.msra.mxu0 %v509
    %536 = vmatprep.subr.mxu0 0.0
    %537 = vmatpush1.msra.mxu0 %v510
    %538 = vmatprep.subr.mxu0 0.0
    %539 = vmatpush1.msra.mxu0 %v511
    %540 = vmatprep.subr.mxu0 0.0
    %541 = vmatpush1.msra.mxu0 %v512
    %542 = vmatprep.subr.mxu0 0.0
    %543 = vmatpush1.msra.mxu0 %v513
    %544 = vmatprep.subr.mxu0 0.0
    %545 = vmatpush1.msra.mxu0 %v514
    %546 = vmatprep.subr.mxu0 0.0
    %547 = vmatpush1.msra.mxu0 %v515
    %548 = vmatprep.subr.mxu0 0.0
    %549 = vmatpush1.msra.mxu0 %v516
    %550 = vmatprep.subr.mxu0 0.0
    %551 = vmatpush1.msra.mxu0 %v517
    %552 = vmatprep.subr.mxu0 0.0
    %553 = vmatpush1.msra.mxu0 %v518
    %554 = vmatprep.subr.mxu0 0.0
    %555 = vmatpush1.msra.mxu0 %v519
    %556 = vmatprep.subr.mxu0 0.0
    %557 = vmatpush1.msra.mxu0 %v520
    %558 = vmatprep.subr.mxu0 0.0
    %559 = vmatpush1.msra.mxu0 %v521
    %560 = vmatprep.subr.mxu0 0.0
    %561 = vmatpush1.msra.mxu0 %v522
    %562 = vmatprep.subr.mxu0 0.0
    %563 = vmatpush1.msra.mxu0 0.0
    %564 = vmatprep.subr.mxu0 0.0
    %565 = vmatpush1.msra.mxu0 0.0
    %566 = vmatprep.subr.mxu0 0.0
    %567 = vmatpush1.msra.mxu0 0.0
    %568 = vmatprep.subr.mxu0 0.0
    %569 = vmatpush1.msra.mxu0 0.0
    %570 = vmatprep.subr.mxu0 0.0
    %571 = vmatpush1.msra.mxu0 0.0
    %572 = vmatprep.subr.mxu0 0.0
    %573 = vmatpush1.msra.mxu0 0.0
    %574 = vmatprep.subr.mxu0 0.0
    %575 = vmatpush1.msra.mxu0 0.0
    %576 = vmatprep.subr.mxu0 0.0
    %577 = vmatpush1.msra.mxu0 0.0
    %578 = vmatprep.subr.mxu0 0.0
    %579 = vmatpush1.msra.mxu0 0.0
    %580 = vmatprep.subr.mxu0 0.0
    %581 = vmatpush1.msra.mxu0 0.0
    %582 = vmatprep.subr.mxu0 0.0
    %583 = vmatpush1.msra.mxu0 0.0
    %584 = vmatprep.subr.mxu0 0.0
    %585 = vmatpush1.msra.mxu0 0.0
    %586 = vmatprep.subr.mxu0 0.0
    %587 = vmatpush1.msra.mxu0 0.0
    %588 = vmatprep.subr.mxu0 0.0
    %589 = vmatpush1.msra.mxu0 0.0
    %590 = vmatprep.subr.mxu0 0.0
    %591 = vmatpush1.msra.mxu0 0.0
    %592 = vmatprep.subr.mxu0 0.0
    %593 = vmatpush1.msra.mxu0 0.0
    %594 = vmatprep.mubr.f32.mxu0 0.0
    %595 = vmatmul.mubr.f32.gmra.mrb[0].mxu0 %v506
    %v596 = vpop.f32.mrb[0].mxu0
    %v597 = vadd.f32 %v528, %v596
    %v598 = vpop.f32.mrb[0].mxu0
    %599 = vdwg.mxu0
    %600 = vst [vmem:[#allocation5] sm:$0x3] %v597
    // Predicated region
    $region42: #{tpu_custom_call.1} parent=1 // pred_check
      _
    $region43: #{tpu_custom_call.1} parent=1 // pred_check_branch
      %602 = sbr.rel (0) target = $region45
    $region44: #{tpu_custom_call.1} parent=1 // pred_region
      %s604 = ssub.s32 32, 32
      %605 = vsyncadd [#allocation4], %s604
      %s607 = sshll.u32 [#allocation5], 4
      %s608 = int_to_ptr.vmem [resolvable:$true] %s607
      %610 = dma.vmem_to_hbm [thread:$0]  %s608, 32, %s9, [#allocation4]
    $region45: #{tpu_custom_call.1} parent=1 // pred_fallthru
      _
    // Predicated region
    $region46: #{tpu_custom_call.1} parent=1 // pred_check
      _
    $region47: #{tpu_custom_call.1} parent=1 // pred_check_branch
      %612 = sbr.rel (0) target = $region49
    $region48: #{tpu_custom_call.1} parent=1 // pred_region
      %613 = dma.done [#allocation4], 32
    $region49: #{tpu_custom_call.1} parent=1 // pred_fallthru
      _
    %614 = vsyncpa [#allocation3], 1
    %615 = vsyncpa [#allocation4], 1

</llo_original>
